<compile_context>
chip_gen: v7x
topology: tpu7x:2x2x1
jax: 0.10.0
libtpu: 0.0.40
codegen_flags: <defaults>
</compile_context>

<pallas_src>
import jax
import jax.numpy as jnp
from jax import lax
from jax.experimental import pallas as pl
from jax.experimental.pallas import tpu as pltpu  # noqa: F401  (TPU backend)

# ----------------------------- sizes (small, synthetic) ----------------------
N = 2          # batch
C_IN = 3       # image channels (inception expects RGB)
H = W = 16     # spatial (stand-in for 299x299)
C_FEAT = 128   # stand-in for inception.fc.in_features (=2048)
EMBED = 32     # embed_size (padded to 128 lanes inside the kernel call)
DROP_P = 0.5   # nn.Dropout(p=0.5); module defaults to train mode


def encoder_cnn_kernel(x_ref, wconv_ref, wfc_ref, bfc_ref, mask_ref, out_ref):
    """Single fused step: backbone stand-in + pool + fc + ReLU + Dropout.

    x_ref    : VMEM (N, C_IN, HW)          images, spatial on lanes
    wconv_ref: VMEM (C_FEAT, C_IN)         stand-in 1x1 conv weight
    wfc_ref  : VMEM (C_FEAT, EMBED_pad)    inception.fc.weight (transposed, lane-padded)
    bfc_ref  : VMEM (1, EMBED_pad)         inception.fc.bias (lane-padded)
    mask_ref : VMEM (N_pad, EMBED_pad)     dropout mask * 1/(1-p) (0 in padding)
    out_ref  : VMEM (N_pad, EMBED_pad)     dense output slab (one f32 vreg)
    """
    n, c_in, hw = x_ref.shape
    c_feat = wconv_ref.shape[0]
    n_pad = out_ref.shape[0]

    chunk = min(128, hw)
    inv_hw = 1.0 / float(hw)

    # Hoist the broadcast conv columns once (outside all chunk loops).
    wc = [jnp.broadcast_to(wconv_ref[:, k:k + 1], (c_feat, chunk))
          for k in range(c_in)]

    cols = []
    for s in range(n):                          # batch: static unroll, one fused step
        acc = jnp.zeros((c_feat, 1), jnp.float32)
        for c0 in range(0, hw, chunk):          # 128-lane HW chunks (static slices;
            csz = min(chunk, hw - c0)           #  equivalent to fori_loop(unroll=True))
            xk = x_ref[s, :, c0:c0 + csz]       # (C_IN, csz) chunk load
            # 1x1 conv as an unrolled K=3 broadcast FMA on the VPU (MXU would
            # pad K=3 to 128/256 and pay a full push/drain for nothing).
            feat = wc[0][:, :csz] * xk[0:1, :]
            for k in range(1, c_in):
                feat = feat + wc[k][:, :csz] * xk[k:k + 1, :]
            feat = jnp.maximum(feat, 0.0)       # backbone nonlinearity
            acc = acc + jnp.sum(feat, axis=-1, keepdims=True)   # XLU lane reduce
        cols.append(acc * inv_hw)               # global average pool (this sample)
    if n_pad > n:                               # pad batch columns -> dense fc output
        cols.append(jnp.zeros((c_feat, n_pad - n), jnp.float32))
    pooled = jnp.concatenate(cols, axis=-1)     # (C_FEAT, N_pad)

    # inception.fc: Linear(C_FEAT -> embed). Contract over C_FEAT directly
    # (transposed-LHS) -> (N_pad, EMBED_pad); M = batch rows on the MXU.
    y = lax.dot_general(
        pooled, wfc_ref[...],
        dimension_numbers=(((0,), (0,)), ((), ())),
        preferred_element_type=jnp.float32,
    )
    y = jnp.maximum(y + bfc_ref[...], 0.0)      # self.relu
    out_ref[...] = y * mask_ref[...]            # self.dropout: one vmul, dense store


def encoder_cnn_forward(images_nchw, wconv, wfc, bfc, rng_key, training=True):
    """images_nchw: (N, C_IN, H, W) f32 -> (N, embed_size) f32."""
    n, c, h, w = images_nchw.shape
    hw = h * w
    c_feat, embed = wfc.shape
    n_pad = ((n + 7) // 8) * 8                   # sublane-pad the batch
    embed_pad = ((embed + 127) // 128) * 128     # lane-pad embed_size

    x = images_nchw.reshape(n, c, hw)

    # Dropout as one precomputed multiplicative mask (keep/(1-p), or 1s in eval).
    # TODO(synk): on real hardware draw the mask in-kernel with pltpu.prng_seed +
    # pltpu.prng_random_bits and drop this HBM input entirely.
    if training:
        keep = jax.random.bernoulli(rng_key, 1.0 - DROP_P, (n, embed))
        mask = keep.astype(jnp.float32) * (1.0 / (1.0 - DROP_P))
    else:
        mask = jnp.ones((n, embed), jnp.float32)

    # Zero-pad everything feeding the fc output so the kernel writes one dense
    # lane-aligned slab; padded rows/lanes come out exactly 0 and are sliced off.
    wfc_p = jnp.zeros((c_feat, embed_pad), jnp.float32).at[:, :embed].set(wfc)
    bfc_p = jnp.zeros((1, embed_pad), jnp.float32).at[:, :embed].set(bfc)
    mask_p = jnp.zeros((n_pad, embed_pad), jnp.float32).at[:n, :embed].set(mask)

    out = pl.pallas_call(
        encoder_cnn_kernel,
        out_shape=jax.ShapeDtypeStruct((n_pad, embed_pad), jnp.float32),
        # No grid: whole batch is one fused step; all operands (a few hundred KiB)
        # fit VMEM, so default full-array VMEM blocks are used.
    )(x, wconv, wfc_p, bfc_p, mask_p)

    return out[:n, :embed]


if __name__ == "__main__":
    key = jax.random.PRNGKey(0)
    k_img, k_conv, k_fc, k_bias, k_drop = jax.random.split(key, 5)

    # Deterministic synthetic inputs / parameters.
    images = jax.random.normal(k_img, (N, C_IN, H, W), dtype=jnp.float32)
    w_conv = jax.random.normal(k_conv, (C_FEAT, C_IN), dtype=jnp.float32) * 0.1
    w_fc = jax.random.normal(k_fc, (C_FEAT, EMBED), dtype=jnp.float32) * 0.05
    b_fc = jax.random.normal(k_bias, (1, EMBED), dtype=jnp.float32) * 0.01

    out = encoder_cnn_forward(images, w_conv, w_fc, b_fc, k_drop, training=True)
    out = jax.block_until_ready(out)

    assert out.shape == (N, EMBED), out.shape
    assert out.dtype == jnp.float32, out.dtype
    # ReLU + non-negative dropout mask => all outputs non-negative.
    assert bool(jnp.all(out >= 0.0))

    # Pure-JAX reference (same stand-in backbone, same dropout mask).
    x2 = images.reshape(N, C_IN, H * W)
    feat_ref = jnp.maximum(jnp.einsum("fc,ncp->nfp", w_conv, x2), 0.0)
    pooled_ref = feat_ref.mean(axis=-1)                         # (N, C_FEAT)
    y_ref = jnp.maximum(pooled_ref @ w_fc + b_fc, 0.0)          # (N, EMBED)
    keep_ref = jax.random.bernoulli(k_drop, 1.0 - DROP_P, (N, EMBED))
    ref = jnp.where(keep_ref, y_ref / (1.0 - DROP_P), 0.0)
    assert bool(jnp.allclose(out, ref, atol=1e-4, rtol=1e-4)), (
        float(jnp.max(jnp.abs(out - ref))))

    print("KERNEL_OK")
</pallas_src>

<mosaic_0001>
module attributes {stable_mosaic.version = 11 : i64} {
  func.func @encoder_cnn_kernel(%arg0: memref<2x3x256xf32, #tpu.memory_space<vmem>>, %arg1: memref<128x3xf32, #tpu.memory_space<vmem>>, %arg2: memref<128x128xf32, #tpu.memory_space<vmem>>, %arg3: memref<1x128xf32, #tpu.memory_space<vmem>>, %arg4: memref<8x128xf32, #tpu.memory_space<vmem>>, %arg5: memref<8x128xf32, #tpu.memory_space<vmem>>) attributes {dimension_semantics = [], scalar_prefetch = 0 : i64, scratch_operands = 0 : i64, tpu.core_type = #tpu.core_type<tc>} {
    %c0 = arith.constant 0 : index
    %c0_0 = arith.constant 0 : index
    %0 = vector.load %arg1[%c0, %c0_0] : memref<128x3xf32, #tpu.memory_space<vmem>>, vector<128x1xf32>
    %1 = vector.shape_cast %0 : vector<128x1xf32> to vector<128x1xf32>
    %2 = vector.broadcast %1 : vector<128x1xf32> to vector<128x128xf32>
    %c0_1 = arith.constant 0 : index
    %c1 = arith.constant 1 : index
    %3 = vector.load %arg1[%c0_1, %c1] : memref<128x3xf32, #tpu.memory_space<vmem>>, vector<128x1xf32>
    %4 = vector.shape_cast %3 : vector<128x1xf32> to vector<128x1xf32>
    %5 = vector.broadcast %4 : vector<128x1xf32> to vector<128x128xf32>
    %c0_2 = arith.constant 0 : index
    %c2 = arith.constant 2 : index
    %6 = vector.load %arg1[%c0_2, %c2] : memref<128x3xf32, #tpu.memory_space<vmem>>, vector<128x1xf32>
    %7 = vector.shape_cast %6 : vector<128x1xf32> to vector<128x1xf32>
    %8 = vector.broadcast %7 : vector<128x1xf32> to vector<128x128xf32>
    %cst = arith.constant 0.000000e+00 : f32
    %9 = vector.broadcast %cst : f32 to vector<128x1xf32>
    %c0_3 = arith.constant 0 : index
    %c0_4 = arith.constant 0 : index
    %c0_5 = arith.constant 0 : index
    %10 = vector.load %arg0[%c0_3, %c0_4, %c0_5] : memref<2x3x256xf32, #tpu.memory_space<vmem>>, vector<1x3x128xf32>
    %11 = vector.shape_cast %10 : vector<1x3x128xf32> to vector<3x128xf32>
    %12 = vector.extract_strided_slice %11 {offsets = [0, 0], sizes = [1, 128], strides = [1, 1]} : vector<3x128xf32> to vector<1x128xf32>
    %13 = vector.broadcast %12 : vector<1x128xf32> to vector<128x128xf32>
    %14 = arith.mulf %2, %13 : vector<128x128xf32>
    %15 = vector.extract_strided_slice %11 {offsets = [1, 0], sizes = [1, 128], strides = [1, 1]} : vector<3x128xf32> to vector<1x128xf32>
    %16 = vector.broadcast %15 : vector<1x128xf32> to vector<128x128xf32>
    %17 = arith.mulf %5, %16 : vector<128x128xf32>
    %18 = arith.addf %14, %17 : vector<128x128xf32>
    %19 = vector.extract_strided_slice %11 {offsets = [2, 0], sizes = [1, 128], strides = [1, 1]} : vector<3x128xf32> to vector<1x128xf32>
    %20 = vector.broadcast %19 : vector<1x128xf32> to vector<128x128xf32>
    %21 = arith.mulf %8, %20 : vector<128x128xf32>
    %22 = arith.addf %18, %21 : vector<128x128xf32>
    %cst_6 = arith.constant 0.000000e+00 : f32
    %23 = vector.broadcast %cst_6 : f32 to vector<128x128xf32>
    %24 = arith.maximumf %22, %23 : vector<128x128xf32>
    %cst_7 = arith.constant dense<0.000000e+00> : vector<128xf32>
    %25 = vector.multi_reduction <add>, %24, %cst_7 [1] : vector<128x128xf32> to vector<128xf32>
    %26 = vector.shape_cast %25 : vector<128xf32> to vector<128x1xf32>
    %27 = arith.addf %9, %26 : vector<128x1xf32>
    %c0_8 = arith.constant 0 : index
    %c0_9 = arith.constant 0 : index
    %c128 = arith.constant 128 : index
    %28 = vector.load %arg0[%c0_8, %c0_9, %c128] : memref<2x3x256xf32, #tpu.memory_space<vmem>>, vector<1x3x128xf32>
    %29 = vector.shape_cast %28 : vector<1x3x128xf32> to vector<3x128xf32>
    %30 = vector.extract_strided_slice %29 {offsets = [0, 0], sizes = [1, 128], strides = [1, 1]} : vector<3x128xf32> to vector<1x128xf32>
    %31 = vector.broadcast %30 : vector<1x128xf32> to vector<128x128xf32>
    %32 = arith.mulf %2, %31 : vector<128x128xf32>
    %33 = vector.extract_strided_slice %29 {offsets = [1, 0], sizes = [1, 128], strides = [1, 1]} : vector<3x128xf32> to vector<1x128xf32>
    %34 = vector.broadcast %33 : vector<1x128xf32> to vector<128x128xf32>
    %35 = arith.mulf %5, %34 : vector<128x128xf32>
    %36 = arith.addf %32, %35 : vector<128x128xf32>
    %37 = vector.extract_strided_slice %29 {offsets = [2, 0], sizes = [1, 128], strides = [1, 1]} : vector<3x128xf32> to vector<1x128xf32>
    %38 = vector.broadcast %37 : vector<1x128xf32> to vector<128x128xf32>
    %39 = arith.mulf %8, %38 : vector<128x128xf32>
    %40 = arith.addf %36, %39 : vector<128x128xf32>
    %cst_10 = arith.constant 0.000000e+00 : f32
    %41 = vector.broadcast %cst_10 : f32 to vector<128x128xf32>
    %42 = arith.maximumf %40, %41 : vector<128x128xf32>
    %cst_11 = arith.constant dense<0.000000e+00> : vector<128xf32>
    %43 = vector.multi_reduction <add>, %42, %cst_11 [1] : vector<128x128xf32> to vector<128xf32>
    %44 = vector.shape_cast %43 : vector<128xf32> to vector<128x1xf32>
    %45 = arith.addf %27, %44 : vector<128x1xf32>
    %cst_12 = arith.constant 3.906250e-03 : f32
    %46 = vector.broadcast %cst_12 : f32 to vector<128x1xf32>
    %47 = arith.mulf %45, %46 : vector<128x1xf32>
    %cst_13 = arith.constant 0.000000e+00 : f32
    %48 = vector.broadcast %cst_13 : f32 to vector<128x1xf32>
    %c1_14 = arith.constant 1 : index
    %c0_15 = arith.constant 0 : index
    %c0_16 = arith.constant 0 : index
    %49 = vector.load %arg0[%c1_14, %c0_15, %c0_16] : memref<2x3x256xf32, #tpu.memory_space<vmem>>, vector<1x3x128xf32>
    %50 = vector.shape_cast %49 : vector<1x3x128xf32> to vector<3x128xf32>
    %51 = vector.extract_strided_slice %50 {offsets = [0, 0], sizes = [1, 128], strides = [1, 1]} : vector<3x128xf32> to vector<1x128xf32>
    %52 = vector.broadcast %51 : vector<1x128xf32> to vector<128x128xf32>
    %53 = arith.mulf %2, %52 : vector<128x128xf32>
    %54 = vector.extract_strided_slice %50 {offsets = [1, 0], sizes = [1, 128], strides = [1, 1]} : vector<3x128xf32> to vector<1x128xf32>
    %55 = vector.broadcast %54 : vector<1x128xf32> to vector<128x128xf32>
    %56 = arith.mulf %5, %55 : vector<128x128xf32>
    %57 = arith.addf %53, %56 : vector<128x128xf32>
    %58 = vector.extract_strided_slice %50 {offsets = [2, 0], sizes = [1, 128], strides = [1, 1]} : vector<3x128xf32> to vector<1x128xf32>
    %59 = vector.broadcast %58 : vector<1x128xf32> to vector<128x128xf32>
    %60 = arith.mulf %8, %59 : vector<128x128xf32>
    %61 = arith.addf %57, %60 : vector<128x128xf32>
    %cst_17 = arith.constant 0.000000e+00 : f32
    %62 = vector.broadcast %cst_17 : f32 to vector<128x128xf32>
    %63 = arith.maximumf %61, %62 : vector<128x128xf32>
    %cst_18 = arith.constant dense<0.000000e+00> : vector<128xf32>
    %64 = vector.multi_reduction <add>, %63, %cst_18 [1] : vector<128x128xf32> to vector<128xf32>
    %65 = vector.shape_cast %64 : vector<128xf32> to vector<128x1xf32>
    %66 = arith.addf %48, %65 : vector<128x1xf32>
    %c1_19 = arith.constant 1 : index
    %c0_20 = arith.constant 0 : index
    %c128_21 = arith.constant 128 : index
    %67 = vector.load %arg0[%c1_19, %c0_20, %c128_21] : memref<2x3x256xf32, #tpu.memory_space<vmem>>, vector<1x3x128xf32>
    %68 = vector.shape_cast %67 : vector<1x3x128xf32> to vector<3x128xf32>
    %69 = vector.extract_strided_slice %68 {offsets = [0, 0], sizes = [1, 128], strides = [1, 1]} : vector<3x128xf32> to vector<1x128xf32>
    %70 = vector.broadcast %69 : vector<1x128xf32> to vector<128x128xf32>
    %71 = arith.mulf %2, %70 : vector<128x128xf32>
    %72 = vector.extract_strided_slice %68 {offsets = [1, 0], sizes = [1, 128], strides = [1, 1]} : vector<3x128xf32> to vector<1x128xf32>
    %73 = vector.broadcast %72 : vector<1x128xf32> to vector<128x128xf32>
    %74 = arith.mulf %5, %73 : vector<128x128xf32>
    %75 = arith.addf %71, %74 : vector<128x128xf32>
    %76 = vector.extract_strided_slice %68 {offsets = [2, 0], sizes = [1, 128], strides = [1, 1]} : vector<3x128xf32> to vector<1x128xf32>
    %77 = vector.broadcast %76 : vector<1x128xf32> to vector<128x128xf32>
    %78 = arith.mulf %8, %77 : vector<128x128xf32>
    %79 = arith.addf %75, %78 : vector<128x128xf32>
    %cst_22 = arith.constant 0.000000e+00 : f32
    %80 = vector.broadcast %cst_22 : f32 to vector<128x128xf32>
    %81 = arith.maximumf %79, %80 : vector<128x128xf32>
    %cst_23 = arith.constant dense<0.000000e+00> : vector<128xf32>
    %82 = vector.multi_reduction <add>, %81, %cst_23 [1] : vector<128x128xf32> to vector<128xf32>
    %83 = vector.shape_cast %82 : vector<128xf32> to vector<128x1xf32>
    %84 = arith.addf %66, %83 : vector<128x1xf32>
    %cst_24 = arith.constant 3.906250e-03 : f32
    %85 = vector.broadcast %cst_24 : f32 to vector<128x1xf32>
    %86 = arith.mulf %84, %85 : vector<128x1xf32>
    %cst_25 = arith.constant 0.000000e+00 : f32
    %87 = vector.broadcast %cst_25 : f32 to vector<128x6xf32>
    %88 = tpu.concatenate %47, %86, %87 in 1 : vector<128x1xf32>, vector<128x1xf32>, vector<128x6xf32> -> vector<128x8xf32>
    %c0_26 = arith.constant 0 : index
    %c0_27 = arith.constant 0 : index
    %89 = vector.load %arg2[%c0_26, %c0_27] : memref<128x128xf32, #tpu.memory_space<vmem>>, vector<128x128xf32>
    %cst_28 = arith.constant dense<0.000000e+00> : vector<8x128xf32>
    %90 = tpu.matmul %88, %89, %cst_28 {dimension_numbers = #tpu.dot_dimension_numbers<[0], [0], [1], [1], [0, 1, 1, 1], [], []>} : vector<128x8xf32>, vector<128x128xf32>, vector<8x128xf32> -> vector<8x128xf32>
    %c0_29 = arith.constant 0 : index
    %c0_30 = arith.constant 0 : index
    %91 = vector.load %arg3[%c0_29, %c0_30] : memref<1x128xf32, #tpu.memory_space<vmem>>, vector<1x128xf32>
    %92 = vector.broadcast %91 : vector<1x128xf32> to vector<8x128xf32>
    %93 = arith.addf %90, %92 : vector<8x128xf32>
    %cst_31 = arith.constant 0.000000e+00 : f32
    %94 = vector.broadcast %cst_31 : f32 to vector<8x128xf32>
    %95 = arith.maximumf %93, %94 : vector<8x128xf32>
    %c0_32 = arith.constant 0 : index
    %c0_33 = arith.constant 0 : index
    %96 = vector.load %arg4[%c0_32, %c0_33] : memref<8x128xf32, #tpu.memory_space<vmem>>, vector<8x128xf32>
    %97 = arith.mulf %95, %96 : vector<8x128xf32>
    %c0_34 = arith.constant 0 : index
    %c0_35 = arith.constant 0 : index
    %98 = vector.load %arg5[%c0_34, %c0_35] : memref<8x128xf32, #tpu.memory_space<vmem>>, vector<8x128xf32>
    tpu.vector_store %arg5[%c0_34, %c0_35], %97 {strides = array<i32>} : memref<8x128xf32, #tpu.memory_space<vmem>>, vector<8x128xf32>,
    return
  }
}

</mosaic_0001>

<llo_original>
// kernel: tpu_custom_call.1
$region0: #{tpu_custom_call.1}
  #allocation0 [shape = 'u32[]', space=smem, size = 0x4, offset = 0x4, fixed_abs, tag = 'smem constant byte address 0x4 - core index']
  #allocation1 [shape = 'u32[144,128]{1,0:T(1,128)}', space=vmem, size = 0x12000, scoped, tag = 'internal scratch']
  %s0 = inlined_call_operand.vmem [shape: f32[2,3,256], index: 0, kind: input, shape index: {}]
  %s1 = inlined_call_operand.vmem [shape: f32[128,3], index: 1, kind: input, shape index: {}]
  %s2 = inlined_call_operand.vmem [shape: f32[128,128], index: 2, kind: input, shape index: {}]
  %s3 = inlined_call_operand.vmem [shape: f32[1,128], index: 3, kind: input, shape index: {}]
  %s4 = inlined_call_operand.vmem [shape: f32[8,128], index: 4, kind: input, shape index: {}]
  %s5 = inlined_call_operand.hbm [shape: f32[8,128], index: 5, kind: output, shape index: {}]
  %s6 = sld [smem:[#allocation0]]
  $region30: #{tpu_custom_call.1} parent=0
    _
  %s8 = ssub.s32 1, %s6
  %s9 = scalar_select 0, %s8, %s6
  $region1: #{tpu_custom_call.1} parent=0
    #allocation2 [shape = 'u8[4096]{0}', space=vmem, size = 0x1000, scoped, tag = 'output window, operand 0, single buffered']
    #allocation3 [shape = 's32[1]{0}', space=sflag, size = 0x4, scoped, tag = 'scoped memory for tpu_custom_call.1']
    %10 = vsyncpa [#allocation3], 0
    // Predicated region
    $region2: #{tpu_custom_call.1} parent=1 // pred_check
      _
    $region3: #{tpu_custom_call.1} parent=1 // pred_check_branch
      %12 = sbr.rel (0) target = $region5
    $region4: #{tpu_custom_call.1} parent=1 // pred_region
      _
    $region5: #{tpu_custom_call.1} parent=1 // pred_fallthru
      _
    // Predicated region
    $region6: #{tpu_custom_call.1} parent=1 // pred_check
      _
    $region7: #{tpu_custom_call.1} parent=1 // pred_check_branch
      %14 = sbr.rel (0) target = $region9
    $region8: #{tpu_custom_call.1} parent=1 // pred_region
      _
    $region9: #{tpu_custom_call.1} parent=1 // pred_fallthru
      _
    // Predicated region
    $region10: #{tpu_custom_call.1} parent=1 // pred_check
      _
    $region11: #{tpu_custom_call.1} parent=1 // pred_check_branch
      %16 = sbr.rel (0) target = $region13
    $region12: #{tpu_custom_call.1} parent=1 // pred_region
      _
    $region13: #{tpu_custom_call.1} parent=1 // pred_fallthru
      _
    // Predicated region
    $region14: #{tpu_custom_call.1} parent=1 // pred_check
      _
    $region15: #{tpu_custom_call.1} parent=1 // pred_check_branch
      %18 = sbr.rel (0) target = $region17
    $region16: #{tpu_custom_call.1} parent=1 // pred_region
      _
    $region17: #{tpu_custom_call.1} parent=1 // pred_fallthru
      _
    // Predicated region
    $region18: #{tpu_custom_call.1} parent=1 // pred_check
      _
    $region19: #{tpu_custom_call.1} parent=1 // pred_check_branch
      %20 = sbr.rel (0) target = $region21
    $region20: #{tpu_custom_call.1} parent=1 // pred_region
      _
    $region21: #{tpu_custom_call.1} parent=1 // pred_fallthru
      _
    %v21 = vld [vmem:[%s1] sm:$0xff]
    %v22 = vld [vmem:[%s1 + $0x8] sm:$0xff]
    %v23 = vld [vmem:[%s1 + $0x10] sm:$0xff]
    %v24 = vld [vmem:[%s1 + $0x18] sm:$0xff]
    %v25 = vld [vmem:[%s1 + $0x20] sm:$0xff]
    %v26 = vld [vmem:[%s1 + $0x28] sm:$0xff]
    %v27 = vld [vmem:[%s1 + $0x30] sm:$0xff]
    %v28 = vld [vmem:[%s1 + $0x38] sm:$0xff]
    %v29 = vld [vmem:[%s1 + $0x40] sm:$0xff]
    %v30 = vld [vmem:[%s1 + $0x48] sm:$0xff]
    %v31 = vld [vmem:[%s1 + $0x50] sm:$0xff]
    %v32 = vld [vmem:[%s1 + $0x58] sm:$0xff]
    %v33 = vld [vmem:[%s1 + $0x60] sm:$0xff]
    %v34 = vld [vmem:[%s1 + $0x68] sm:$0xff]
    %v35 = vld [vmem:[%s1 + $0x70] sm:$0xff]
    %v36 = vld [vmem:[%s1 + $0x78] sm:$0xff]
    %38 = vset.pattern.permute.xlu0 0
    %39 = vperm.xlu0 %38, %v21
    %v40 = vpop.permute.xlu0 %39
    %43 = vset.pattern.permute.xlu0 0
    %44 = vperm.xlu0 %43, %v22
    %v45 = vpop.permute.xlu0 %44
    %48 = vset.pattern.permute.xlu0 0
    %49 = vperm.xlu0 %48, %v23
    %v50 = vpop.permute.xlu0 %49
    %53 = vset.pattern.permute.xlu0 0
    %54 = vperm.xlu0 %53, %v24
    %v55 = vpop.permute.xlu0 %54
    %58 = vset.pattern.permute.xlu0 0
    %59 = vperm.xlu0 %58, %v25
    %v60 = vpop.permute.xlu0 %59
    %63 = vset.pattern.permute.xlu0 0
    %64 = vperm.xlu0 %63, %v26
    %v65 = vpop.permute.xlu0 %64
    %68 = vset.pattern.permute.xlu0 0
    %69 = vperm.xlu0 %68, %v27
    %v70 = vpop.permute.xlu0 %69
    %73 = vset.pattern.permute.xlu0 0
    %74 = vperm.xlu0 %73, %v28
    %v75 = vpop.permute.xlu0 %74
    %78 = vset.pattern.permute.xlu0 0
    %79 = vperm.xlu0 %78, %v29
    %v80 = vpop.permute.xlu0 %79
    %83 = vset.pattern.permute.xlu0 0
    %84 = vperm.xlu0 %83, %v30
    %v85 = vpop.permute.xlu0 %84
    %88 = vset.pattern.permute.xlu0 0
    %89 = vperm.xlu0 %88, %v31
    %v90 = vpop.permute.xlu0 %89
    %93 = vset.pattern.permute.xlu0 0
    %94 = vperm.xlu0 %93, %v32
    %v95 = vpop.permute.xlu0 %94
    %98 = vset.pattern.permute.xlu0 0
    %99 = vperm.xlu0 %98, %v33
    %v100 = vpop.permute.xlu0 %99
    %103 = vset.pattern.permute.xlu0 0
    %104 = vperm.xlu0 %103, %v34
    %v105 = vpop.permute.xlu0 %104
    %108 = vset.pattern.permute.xlu0 0
    %109 = vperm.xlu0 %108, %v35
    %v110 = vpop.permute.xlu0 %109
    %113 = vset.pattern.permute.xlu0 0
    %114 = vperm.xlu0 %113, %v36
    %v115 = vpop.permute.xlu0 %114
    %117 = vset.pattern.permute.xlu0 1
    %118 = vperm.xlu0 %117, %v21
    %v119 = vpop.permute.xlu0 %118
    %121 = vset.pattern.permute.xlu0 1
    %122 = vperm.xlu0 %121, %v22
    %v123 = vpop.permute.xlu0 %122
    %125 = vset.pattern.permute.xlu0 1
    %126 = vperm.xlu0 %125, %v23
    %v127 = vpop.permute.xlu0 %126
    %129 = vset.pattern.permute.xlu0 1
    %130 = vperm.xlu0 %129, %v24
    %v131 = vpop.permute.xlu0 %130
    %133 = vset.pattern.permute.xlu0 1
    %134 = vperm.xlu0 %133, %v25
    %v135 = vpop.permute.xlu0 %134
    %137 = vset.pattern.permute.xlu0 1
    %138 = vperm.xlu0 %137, %v26
    %v139 = vpop.permute.xlu0 %138
    %141 = vset.pattern.permute.xlu0 1
    %142 = vperm.xlu0 %141, %v27
    %v143 = vpop.permute.xlu0 %142
    %145 = vset.pattern.permute.xlu0 1
    %146 = vperm.xlu0 %145, %v28
    %v147 = vpop.permute.xlu0 %146
    %149 = vset.pattern.permute.xlu0 1
    %150 = vperm.xlu0 %149, %v29
    %v151 = vpop.permute.xlu0 %150
    %153 = vset.pattern.permute.xlu0 1
    %154 = vperm.xlu0 %153, %v30
    %v155 = vpop.permute.xlu0 %154
    %157 = vset.pattern.permute.xlu0 1
    %158 = vperm.xlu0 %157, %v31
    %v159 = vpop.permute.xlu0 %158
    %161 = vset.pattern.permute.xlu0 1
    %162 = vperm.xlu0 %161, %v32
    %v163 = vpop.permute.xlu0 %162
    %165 = vset.pattern.permute.xlu0 1
    %166 = vperm.xlu0 %165, %v33
    %v167 = vpop.permute.xlu0 %166
    %169 = vset.pattern.permute.xlu0 1
    %170 = vperm.xlu0 %169, %v34
    %v171 = vpop.permute.xlu0 %170
    %173 = vset.pattern.permute.xlu0 1
    %174 = vperm.xlu0 %173, %v35
    %v175 = vpop.permute.xlu0 %174
    %177 = vset.pattern.permute.xlu0 1
    %178 = vperm.xlu0 %177, %v36
    %v179 = vpop.permute.xlu0 %178
    %181 = vset.pattern.permute.xlu0 2
    %182 = vperm.xlu0 %181, %v21
    %v183 = vpop.permute.xlu0 %182
    %185 = vset.pattern.permute.xlu0 2
    %186 = vperm.xlu0 %185, %v22
    %v187 = vpop.permute.xlu0 %186
    %189 = vset.pattern.permute.xlu0 2
    %190 = vperm.xlu0 %189, %v23
    %v191 = vpop.permute.xlu0 %190
    %193 = vset.pattern.permute.xlu0 2
    %194 = vperm.xlu0 %193, %v24
    %v195 = vpop.permute.xlu0 %194
    %197 = vset.pattern.permute.xlu0 2
    %198 = vperm.xlu0 %197, %v25
    %v199 = vpop.permute.xlu0 %198
    %201 = vset.pattern.permute.xlu0 2
    %202 = vperm.xlu0 %201, %v26
    %v203 = vpop.permute.xlu0 %202
    %205 = vset.pattern.permute.xlu0 2
    %206 = vperm.xlu0 %205, %v27
    %v207 = vpop.permute.xlu0 %206
    %209 = vset.pattern.permute.xlu0 2
    %210 = vperm.xlu0 %209, %v28
    %v211 = vpop.permute.xlu0 %210
    %213 = vset.pattern.permute.xlu0 2
    %214 = vperm.xlu0 %213, %v29
    %v215 = vpop.permute.xlu0 %214
    %217 = vset.pattern.permute.xlu0 2
    %218 = vperm.xlu0 %217, %v30
    %v219 = vpop.permute.xlu0 %218
    %221 = vset.pattern.permute.xlu0 2
    %222 = vperm.xlu0 %221, %v31
    %v223 = vpop.permute.xlu0 %222
    %225 = vset.pattern.permute.xlu0 2
    %226 = vperm.xlu0 %225, %v32
    %v227 = vpop.permute.xlu0 %226
    %229 = vset.pattern.permute.xlu0 2
    %230 = vperm.xlu0 %229, %v33
    %v231 = vpop.permute.xlu0 %230
    %233 = vset.pattern.permute.xlu0 2
    %234 = vperm.xlu0 %233, %v34
    %v235 = vpop.permute.xlu0 %234
    %237 = vset.pattern.permute.xlu0 2
    %238 = vperm.xlu0 %237, %v35
    %v239 = vpop.permute.xlu0 %238
    %241 = vset.pattern.permute.xlu0 2
    %242 = vperm.xlu0 %241, %v36
    %v243 = vpop.permute.xlu0 %242
    %v245 = vld [vmem:[%s0] sm:$0x7]
    %v246 = vlaneseq
    %v247 = vshrl.u32 %v246, 7
    %v248 = vsub.s32 0, %v247
    %v249 = vrot.slane %v245, %v248
    %v250 = vmul.f32 %v40, %v249
    %v251 = vmul.f32 %v45, %v249
    %v252 = vmul.f32 %v50, %v249
    %v253 = vmul.f32 %v55, %v249
    %v254 = vmul.f32 %v60, %v249
    %v255 = vmul.f32 %v65, %v249
    %v256 = vmul.f32 %v70, %v249
    %v257 = vmul.f32 %v75, %v249
    %v258 = vmul.f32 %v80, %v249
    %v259 = vmul.f32 %v85, %v249
    %v260 = vmul.f32 %v90, %v249
    %v261 = vmul.f32 %v95, %v249
    %v262 = vmul.f32 %v100, %v249
    %v263 = vmul.f32 %v105, %v249
    %v264 = vmul.f32 %v110, %v249
    %v265 = vmul.f32 %v115, %v249
    %v266 = vlaneseq
    %v267 = vshrl.u32 %v266, 7
    %v268 = vsub.s32 1, %v267
    %v269 = vrot.slane %v245, %v268
    %v270 = vmul.f32 %v119, %v269
    %v271 = vmul.f32 %v123, %v269
    %v272 = vmul.f32 %v127, %v269
    %v273 = vmul.f32 %v131, %v269
    %v274 = vmul.f32 %v135, %v269
    %v275 = vmul.f32 %v139, %v269
    %v276 = vmul.f32 %v143, %v269
    %v277 = vmul.f32 %v147, %v269
    %v278 = vmul.f32 %v151, %v269
    %v279 = vmul.f32 %v155, %v269
    %v280 = vmul.f32 %v159, %v269
    %v281 = vmul.f32 %v163, %v269
    %v282 = vmul.f32 %v167, %v269
    %v283 = vmul.f32 %v171, %v269
    %v284 = vmul.f32 %v175, %v269
    %v285 = vmul.f32 %v179, %v269
    %v286 = vadd.f32 %v250, %v270
    %v287 = vadd.f32 %v251, %v271
    %v288 = vadd.f32 %v252, %v272
    %v289 = vadd.f32 %v253, %v273
    %v290 = vadd.f32 %v254, %v274
    %v291 = vadd.f32 %v255, %v275
    %v292 = vadd.f32 %v256, %v276
    %v293 = vadd.f32 %v257, %v277
    %v294 = vadd.f32 %v258, %v278
    %v295 = vadd.f32 %v259, %v279
    %v296 = vadd.f32 %v260, %v280
    %v297 = vadd.f32 %v261, %v281
    %v298 = vadd.f32 %v262, %v282
    %v299 = vadd.f32 %v263, %v283
    %v300 = vadd.f32 %v264, %v284
    %v301 = vadd.f32 %v265, %v285
    %v302 = vlaneseq
    %v303 = vshrl.u32 %v302, 7
    %v304 = vsub.s32 2, %v303
    %v305 = vrot.slane %v245, %v304
    %v306 = vmul.f32 %v183, %v305
    %v307 = vmul.f32 %v187, %v305
    %v308 = vmul.f32 %v191, %v305
    %v309 = vmul.f32 %v195, %v305
    %v310 = vmul.f32 %v199, %v305
    %v311 = vmul.f32 %v203, %v305
    %v312 = vmul.f32 %v207, %v305
    %v313 = vmul.f32 %v211, %v305
    %v314 = vmul.f32 %v215, %v305
    %v315 = vmul.f32 %v219, %v305
    %v316 = vmul.f32 %v223, %v305
    %v317 = vmul.f32 %v227, %v305
    %v318 = vmul.f32 %v231, %v305
    %v319 = vmul.f32 %v235, %v305
    %v320 = vmul.f32 %v239, %v305
    %v321 = vmul.f32 %v243, %v305
    %v322 = vadd.f32 %v286, %v306
    %v323 = vadd.f32 %v287, %v307
    %v324 = vadd.f32 %v288, %v308
    %v325 = vadd.f32 %v289, %v309
    %v326 = vadd.f32 %v290, %v310
    %v327 = vadd.f32 %v291, %v311
    %v328 = vadd.f32 %v292, %v312
    %v329 = vadd.f32 %v293, %v313
    %v330 = vadd.f32 %v294, %v314
    %v331 = vadd.f32 %v295, %v315
    %v332 = vadd.f32 %v296, %v316
    %v333 = vadd.f32 %v297, %v317
    %v334 = vadd.f32 %v298, %v318
    %v335 = vadd.f32 %v299, %v319
    %v336 = vadd.f32 %v300, %v320
    %v337 = vadd.f32 %v301, %v321
    %v338 = vmax.f32 %v322, 0.0
    %v339 = vmax.f32 %v323, 0.0
    %v340 = vmax.f32 %v324, 0.0
    %v341 = vmax.f32 %v325, 0.0
    %v342 = vmax.f32 %v326, 0.0
    %v343 = vmax.f32 %v327, 0.0
    %v344 = vmax.f32 %v328, 0.0
    %v345 = vmax.f32 %v329, 0.0
    %v346 = vmax.f32 %v330, 0.0
    %v347 = vmax.f32 %v331, 0.0
    %v348 = vmax.f32 %v332, 0.0
    %v349 = vmax.f32 %v333, 0.0
    %v350 = vmax.f32 %v334, 0.0
    %v351 = vmax.f32 %v335, 0.0
    %v352 = vmax.f32 %v336, 0.0
    %v353 = vmax.f32 %v337, 0.0
    %354 = vadd.xlane.f32.xlu0 %v338
    %v355 = vpop.xlane.xlu0 %354
    %356 = vadd.xlane.f32.xlu0 %v339
    %v357 = vpop.xlane.xlu0 %356
    %358 = vadd.xlane.f32.xlu0 %v340
    %v359 = vpop.xlane.xlu0 %358
    %360 = vadd.xlane.f32.xlu0 %v341
    %v361 = vpop.xlane.xlu0 %360
    %362 = vadd.xlane.f32.xlu0 %v342
    %v363 = vpop.xlane.xlu0 %362
    %364 = vadd.xlane.f32.xlu0 %v343
    %v365 = vpop.xlane.xlu0 %364
    %366 = vadd.xlane.f32.xlu0 %v344
    %v367 = vpop.xlane.xlu0 %366
    %368 = vadd.xlane.f32.xlu0 %v345
    %v369 = vpop.xlane.xlu0 %368
    %370 = vadd.xlane.f32.xlu0 %v346
    %v371 = vpop.xlane.xlu0 %370
    %372 = vadd.xlane.f32.xlu0 %v347
    %v373 = vpop.xlane.xlu0 %372
    %374 = vadd.xlane.f32.xlu0 %v348
    %v375 = vpop.xlane.xlu0 %374
    %376 = vadd.xlane.f32.xlu0 %v349
    %v377 = vpop.xlane.xlu0 %376
    %378 = vadd.xlane.f32.xlu0 %v350
    %v379 = vpop.xlane.xlu0 %378
    %380 = vadd.xlane.f32.xlu0 %v351
    %v381 = vpop.xlane.xlu0 %380
    %382 = vadd.xlane.f32.xlu0 %v352
    %v383 = vpop.xlane.xlu0 %382
    %384 = vadd.xlane.f32.xlu0 %v353
    %v385 = vpop.xlane.xlu0 %384
    %v386 = vadd.f32 %v355, 0.0
    %v387 = vadd.f32 %v357, 0.0
    %v388 = vadd.f32 %v359, 0.0
    %v389 = vadd.f32 %v361, 0.0
    %v390 = vadd.f32 %v363, 0.0
    %v391 = vadd.f32 %v365, 0.0
    %v392 = vadd.f32 %v367, 0.0
    %v393 = vadd.f32 %v369, 0.0
    %v394 = vadd.f32 %v371, 0.0
    %v395 = vadd.f32 %v373, 0.0
    %v396 = vadd.f32 %v375, 0.0
    %v397 = vadd.f32 %v377, 0.0
    %v398 = vadd.f32 %v379, 0.0
    %v399 = vadd.f32 %v381, 0.0
    %v400 = vadd.f32 %v383, 0.0
    %v401 = vadd.f32 %v385, 0.0
    %v402 = vld [vmem:[%s0 + $0x4] sm:$0x7]
    %v403 = vlaneseq
    %v404 = vshrl.u32 %v403, 7
    %v405 = vsub.s32 0, %v404
    %v406 = vrot.slane %v402, %v405
    %v407 = vmul.f32 %v40, %v406
    %v408 = vmul.f32 %v45, %v406
    %v409 = vmul.f32 %v50, %v406
    %v410 = vmul.f32 %v55, %v406
    %v411 = vmul.f32 %v60, %v406
    %v412 = vmul.f32 %v65, %v406
    %v413 = vmul.f32 %v70, %v406
    %v414 = vmul.f32 %v75, %v406
    %v415 = vmul.f32 %v80, %v406
    %v416 = vmul.f32 %v85, %v406
    %v417 = vmul.f32 %v90, %v406
    %v418 = vmul.f32 %v95, %v406
    %v419 = vmul.f32 %v100, %v406
    %v420 = vmul.f32 %v105, %v406
    %v421 = vmul.f32 %v110, %v406
    %v422 = vmul.f32 %v115, %v406
    %v423 = vlaneseq
    %v424 = vshrl.u32 %v423, 7
    %v425 = vsub.s32 1, %v424
    %v426 = vrot.slane %v402, %v425
    %v427 = vmul.f32 %v119, %v426
    %v428 = vmul.f32 %v123, %v426
    %v429 = vmul.f32 %v127, %v426
    %v430 = vmul.f32 %v131, %v426
    %v431 = vmul.f32 %v135, %v426
    %v432 = vmul.f32 %v139, %v426
    %v433 = vmul.f32 %v143, %v426
    %v434 = vmul.f32 %v147, %v426
    %v435 = vmul.f32 %v151, %v426
    %v436 = vmul.f32 %v155, %v426
    %v437 = vmul.f32 %v159, %v426
    %v438 = vmul.f32 %v163, %v426
    %v439 = vmul.f32 %v167, %v426
    %v440 = vmul.f32 %v171, %v426
    %v441 = vmul.f32 %v175, %v426
    %v442 = vmul.f32 %v179, %v426
    %v443 = vadd.f32 %v407, %v427
    %v444 = vadd.f32 %v408, %v428
    %v445 = vadd.f32 %v409, %v429
    %v446 = vadd.f32 %v410, %v430
    %v447 = vadd.f32 %v411, %v431
    %v448 = vadd.f32 %v412, %v432
    %v449 = vadd.f32 %v413, %v433
    %v450 = vadd.f32 %v414, %v434
    %v451 = vadd.f32 %v415, %v435
    %v452 = vadd.f32 %v416, %v436
    %v453 = vadd.f32 %v417, %v437
    %v454 = vadd.f32 %v418, %v438
    %v455 = vadd.f32 %v419, %v439
    %v456 = vadd.f32 %v420, %v440
    %v457 = vadd.f32 %v421, %v441
    %v458 = vadd.f32 %v422, %v442
    %v459 = vlaneseq
    %v460 = vshrl.u32 %v459, 7
    %v461 = vsub.s32 2, %v460
    %v462 = vrot.slane %v402, %v461
    %v463 = vmul.f32 %v183, %v462
    %v464 = vmul.f32 %v187, %v462
    %v465 = vmul.f32 %v191, %v462
    %v466 = vmul.f32 %v195, %v462
    %v467 = vmul.f32 %v199, %v462
    %v468 = vmul.f32 %v203, %v462
    %v469 = vmul.f32 %v207, %v462
    %v470 = vmul.f32 %v211, %v462
    %v471 = vmul.f32 %v215, %v462
    %v472 = vmul.f32 %v219, %v462
    %v473 = vmul.f32 %v223, %v462
    %v474 = vmul.f32 %v227, %v462
    %v475 = vmul.f32 %v231, %v462
    %v476 = vmul.f32 %v235, %v462
    %v477 = vmul.f32 %v239, %v462
    %v478 = vmul.f32 %v243, %v462
    %v479 = vadd.f32 %v443, %v463
    %v480 = vadd.f32 %v444, %v464
    %v481 = vadd.f32 %v445, %v465
    %v482 = vadd.f32 %v446, %v466
    %v483 = vadd.f32 %v447, %v467
    %v484 = vadd.f32 %v448, %v468
    %v485 = vadd.f32 %v449, %v469
    %v486 = vadd.f32 %v450, %v470
    %v487 = vadd.f32 %v451, %v471
    %v488 = vadd.f32 %v452, %v472
    %v489 = vadd.f32 %v453, %v473
    %v490 = vadd.f32 %v454, %v474
    %v491 = vadd.f32 %v455, %v475
    %v492 = vadd.f32 %v456, %v476
    %v493 = vadd.f32 %v457, %v477
    %v494 = vadd.f32 %v458, %v478
    %v495 = vmax.f32 %v479, 0.0
    %v496 = vmax.f32 %v480, 0.0
    %v497 = vmax.f32 %v481, 0.0
    %v498 = vmax.f32 %v482, 0.0
    %v499 = vmax.f32 %v483, 0.0
    %v500 = vmax.f32 %v484, 0.0
    %v501 = vmax.f32 %v485, 0.0
    %v502 = vmax.f32 %v486, 0.0
    %v503 = vmax.f32 %v487, 0.0
    %v504 = vmax.f32 %v488, 0.0
    %v505 = vmax.f32 %v489, 0.0
    %v506 = vmax.f32 %v490, 0.0
    %v507 = vmax.f32 %v491, 0.0
    %v508 = vmax.f32 %v492, 0.0
    %v509 = vmax.f32 %v493, 0.0
    %v510 = vmax.f32 %v494, 0.0
    %511 = vadd.xlane.f32.xlu0 %v495
    %v512 = vpop.xlane.xlu0 %511
    %513 = vadd.xlane.f32.xlu0 %v496
    %v514 = vpop.xlane.xlu0 %513
    %515 = vadd.xlane.f32.xlu0 %v497
    %v516 = vpop.xlane.xlu0 %515
    %517 = vadd.xlane.f32.xlu0 %v498
    %v518 = vpop.xlane.xlu0 %517
    %519 = vadd.xlane.f32.xlu0 %v499
    %v520 = vpop.xlane.xlu0 %519
    %521 = vadd.xlane.f32.xlu0 %v500
    %v522 = vpop.xlane.xlu0 %521
    %523 = vadd.xlane.f32.xlu0 %v501
    %v524 = vpop.xlane.xlu0 %523
    %525 = vadd.xlane.f32.xlu0 %v502
    %v526 = vpop.xlane.xlu0 %525
    %527 = vadd.xlane.f32.xlu0 %v503
    %v528 = vpop.xlane.xlu0 %527
    %529 = vadd.xlane.f32.xlu0 %v504
    %v530 = vpop.xlane.xlu0 %529
    %531 = vadd.xlane.f32.xlu0 %v505
    %v532 = vpop.xlane.xlu0 %531
    %533 = vadd.xlane.f32.xlu0 %v506
    %v534 = vpop.xlane.xlu0 %533
    %535 = vadd.xlane.f32.xlu0 %v507
    %v536 = vpop.xlane.xlu0 %535
    %537 = vadd.xlane.f32.xlu0 %v508
    %v538 = vpop.xlane.xlu0 %537
    %539 = vadd.xlane.f32.xlu0 %v509
    %v540 = vpop.xlane.xlu0 %539
    %541 = vadd.xlane.f32.xlu0 %v510
    %v542 = vpop.xlane.xlu0 %541
    %v543 = vadd.f32 %v386, %v512
    %v544 = vadd.f32 %v387, %v514
    %v545 = vadd.f32 %v388, %v516
    %v546 = vadd.f32 %v389, %v518
    %v547 = vadd.f32 %v390, %v520
    %v548 = vadd.f32 %v391, %v522
    %v549 = vadd.f32 %v392, %v524
    %v550 = vadd.f32 %v393, %v526
    %v551 = vadd.f32 %v394, %v528
    %v552 = vadd.f32 %v395, %v530
    %v553 = vadd.f32 %v396, %v532
    %v554 = vadd.f32 %v397, %v534
    %v555 = vadd.f32 %v398, %v536
    %v556 = vadd.f32 %v399, %v538
    %v557 = vadd.f32 %v400, %v540
    %v558 = vadd.f32 %v401, %v542
    %v559 = vmul.f32 %v543, 0.00390625
    %v560 = vmul.f32 %v544, 0.00390625
    %v561 = vmul.f32 %v545, 0.00390625
    %v562 = vmul.f32 %v546, 0.00390625
    %v563 = vmul.f32 %v547, 0.00390625
    %v564 = vmul.f32 %v548, 0.00390625
    %v565 = vmul.f32 %v549, 0.00390625
    %v566 = vmul.f32 %v550, 0.00390625
    %v567 = vmul.f32 %v551, 0.00390625
    %v568 = vmul.f32 %v552, 0.00390625
    %v569 = vmul.f32 %v553, 0.00390625
    %v570 = vmul.f32 %v554, 0.00390625
    %v571 = vmul.f32 %v555, 0.00390625
    %v572 = vmul.f32 %v556, 0.00390625
    %v573 = vmul.f32 %v557, 0.00390625
    %v574 = vmul.f32 %v558, 0.00390625
    %s575 = scalar_lea.vmem %s0, 8
    %v576 = vld [vmem:[%s575] sm:$0x7]
    %v577 = vlaneseq
    %v578 = vshrl.u32 %v577, 7
    %v579 = vsub.s32 0, %v578
    %v580 = vrot.slane %v576, %v579
    %v581 = vmul.f32 %v40, %v580
    %v582 = vmul.f32 %v45, %v580
    %v583 = vmul.f32 %v50, %v580
    %v584 = vmul.f32 %v55, %v580
    %v585 = vmul.f32 %v60, %v580
    %v586 = vmul.f32 %v65, %v580
    %v587 = vmul.f32 %v70, %v580
    %v588 = vmul.f32 %v75, %v580
    %v589 = vmul.f32 %v80, %v580
    %v590 = vmul.f32 %v85, %v580
    %v591 = vmul.f32 %v90, %v580
    %v592 = vmul.f32 %v95, %v580
    %v593 = vmul.f32 %v100, %v580
    %v594 = vmul.f32 %v105, %v580
    %v595 = vmul.f32 %v110, %v580
    %v596 = vmul.f32 %v115, %v580
    %v597 = vlaneseq
    %v598 = vshrl.u32 %v597, 7
    %v599 = vsub.s32 1, %v598
    %v600 = vrot.slane %v576, %v599
    %v601 = vmul.f32 %v119, %v600
    %v602 = vmul.f32 %v123, %v600
    %v603 = vmul.f32 %v127, %v600
    %v604 = vmul.f32 %v131, %v600
    %v605 = vmul.f32 %v135, %v600
    %v606 = vmul.f32 %v139, %v600
    %v607 = vmul.f32 %v143, %v600
    %v608 = vmul.f32 %v147, %v600
    %v609 = vmul.f32 %v151, %v600
    %v610 = vmul.f32 %v155, %v600
    %v611 = vmul.f32 %v159, %v600
    %v612 = vmul.f32 %v163, %v600
    %v613 = vmul.f32 %v167, %v600
    %v614 = vmul.f32 %v171, %v600
    %v615 = vmul.f32 %v175, %v600
    %v616 = vmul.f32 %v179, %v600
    %v617 = vadd.f32 %v581, %v601
    %v618 = vadd.f32 %v582, %v602
    %v619 = vadd.f32 %v583, %v603
    %v620 = vadd.f32 %v584, %v604
    %v621 = vadd.f32 %v585, %v605
    %v622 = vadd.f32 %v586, %v606
    %v623 = vadd.f32 %v587, %v607
    %v624 = vadd.f32 %v588, %v608
    %v625 = vadd.f32 %v589, %v609
    %v626 = vadd.f32 %v590, %v610
    %v627 = vadd.f32 %v591, %v611
    %v628 = vadd.f32 %v592, %v612
    %v629 = vadd.f32 %v593, %v613
    %v630 = vadd.f32 %v594, %v614
    %v631 = vadd.f32 %v595, %v615
    %v632 = vadd.f32 %v596, %v616
    %v633 = vlaneseq
    %v634 = vshrl.u32 %v633, 7
    %v635 = vsub.s32 2, %v634
    %v636 = vrot.slane %v576, %v635
    %v637 = vmul.f32 %v183, %v636
    %v638 = vmul.f32 %v187, %v636
    %v639 = vmul.f32 %v191, %v636
    %v640 = vmul.f32 %v195, %v636
    %v641 = vmul.f32 %v199, %v636
    %v642 = vmul.f32 %v203, %v636
    %v643 = vmul.f32 %v207, %v636
    %v644 = vmul.f32 %v211, %v636
    %v645 = vmul.f32 %v215, %v636
    %v646 = vmul.f32 %v219, %v636
    %v647 = vmul.f32 %v223, %v636
    %v648 = vmul.f32 %v227, %v636
    %v649 = vmul.f32 %v231, %v636
    %v650 = vmul.f32 %v235, %v636
    %v651 = vmul.f32 %v239, %v636
    %v652 = vmul.f32 %v243, %v636
    %v653 = vadd.f32 %v617, %v637
    %v654 = vadd.f32 %v618, %v638
    %v655 = vadd.f32 %v619, %v639
    %v656 = vadd.f32 %v620, %v640
    %v657 = vadd.f32 %v621, %v641
    %v658 = vadd.f32 %v622, %v642
    %v659 = vadd.f32 %v623, %v643
    %v660 = vadd.f32 %v624, %v644
    %v661 = vadd.f32 %v625, %v645
    %v662 = vadd.f32 %v626, %v646
    %v663 = vadd.f32 %v627, %v647
    %v664 = vadd.f32 %v628, %v648
    %v665 = vadd.f32 %v629, %v649
    %v666 = vadd.f32 %v630, %v650
    %v667 = vadd.f32 %v631, %v651
    %v668 = vadd.f32 %v632, %v652
    %v669 = vmax.f32 %v653, 0.0
    %v670 = vmax.f32 %v654, 0.0
    %v671 = vmax.f32 %v655, 0.0
    %v672 = vmax.f32 %v656, 0.0
    %v673 = vmax.f32 %v657, 0.0
    %v674 = vmax.f32 %v658, 0.0
    %v675 = vmax.f32 %v659, 0.0
    %v676 = vmax.f32 %v660, 0.0
    %v677 = vmax.f32 %v661, 0.0
    %v678 = vmax.f32 %v662, 0.0
    %v679 = vmax.f32 %v663, 0.0
    %v680 = vmax.f32 %v664, 0.0
    %v681 = vmax.f32 %v665, 0.0
    %v682 = vmax.f32 %v666, 0.0
    %v683 = vmax.f32 %v667, 0.0
    %v684 = vmax.f32 %v668, 0.0
    %685 = vadd.xlane.f32.xlu0 %v669
    %v686 = vpop.xlane.xlu0 %685
    %687 = vadd.xlane.f32.xlu0 %v670
    %v688 = vpop.xlane.xlu0 %687
    %689 = vadd.xlane.f32.xlu0 %v671
    %v690 = vpop.xlane.xlu0 %689
    %691 = vadd.xlane.f32.xlu0 %v672
    %v692 = vpop.xlane.xlu0 %691
    %693 = vadd.xlane.f32.xlu0 %v673
    %v694 = vpop.xlane.xlu0 %693
    %695 = vadd.xlane.f32.xlu0 %v674
    %v696 = vpop.xlane.xlu0 %695
    %697 = vadd.xlane.f32.xlu0 %v675
    %v698 = vpop.xlane.xlu0 %697
    %699 = vadd.xlane.f32.xlu0 %v676
    %v700 = vpop.xlane.xlu0 %699
    %701 = vadd.xlane.f32.xlu0 %v677
    %v702 = vpop.xlane.xlu0 %701
    %703 = vadd.xlane.f32.xlu0 %v678
    %v704 = vpop.xlane.xlu0 %703
    %705 = vadd.xlane.f32.xlu0 %v679
    %v706 = vpop.xlane.xlu0 %705
    %707 = vadd.xlane.f32.xlu0 %v680
    %v708 = vpop.xlane.xlu0 %707
    %709 = vadd.xlane.f32.xlu0 %v681
    %v710 = vpop.xlane.xlu0 %709
    %711 = vadd.xlane.f32.xlu0 %v682
    %v712 = vpop.xlane.xlu0 %711
    %713 = vadd.xlane.f32.xlu0 %v683
    %v714 = vpop.xlane.xlu0 %713
    %715 = vadd.xlane.f32.xlu0 %v684
    %v716 = vpop.xlane.xlu0 %715
    %v717 = vadd.f32 %v686, 0.0
    %v718 = vadd.f32 %v688, 0.0
    %v719 = vadd.f32 %v690, 0.0
    %v720 = vadd.f32 %v692, 0.0
    %v721 = vadd.f32 %v694, 0.0
    %v722 = vadd.f32 %v696, 0.0
    %v723 = vadd.f32 %v698, 0.0
    %v724 = vadd.f32 %v700, 0.0
    %v725 = vadd.f32 %v702, 0.0
    %v726 = vadd.f32 %v704, 0.0
    %v727 = vadd.f32 %v706, 0.0
    %v728 = vadd.f32 %v708, 0.0
    %v729 = vadd.f32 %v710, 0.0
    %v730 = vadd.f32 %v712, 0.0
    %v731 = vadd.f32 %v714, 0.0
    %v732 = vadd.f32 %v716, 0.0
    %v733 = vld [vmem:[%s575 + $0x4] sm:$0x7]
    %v734 = vlaneseq
    %v735 = vshrl.u32 %v734, 7
    %v736 = vsub.s32 0, %v735
    %v737 = vrot.slane %v733, %v736
    %v738 = vmul.f32 %v40, %v737
    %v739 = vmul.f32 %v45, %v737
    %v740 = vmul.f32 %v50, %v737
    %v741 = vmul.f32 %v55, %v737
    %v742 = vmul.f32 %v60, %v737
    %v743 = vmul.f32 %v65, %v737
    %v744 = vmul.f32 %v70, %v737
    %v745 = vmul.f32 %v75, %v737
    %v746 = vmul.f32 %v80, %v737
    %v747 = vmul.f32 %v85, %v737
    %v748 = vmul.f32 %v90, %v737
    %v749 = vmul.f32 %v95, %v737
    %v750 = vmul.f32 %v100, %v737
    %v751 = vmul.f32 %v105, %v737
    %v752 = vmul.f32 %v110, %v737
    %v753 = vmul.f32 %v115, %v737
    %v754 = vlaneseq
    %v755 = vshrl.u32 %v754, 7
    %v756 = vsub.s32 1, %v755
    %v757 = vrot.slane %v733, %v756
    %v758 = vmul.f32 %v119, %v757
    %v759 = vmul.f32 %v123, %v757
    %v760 = vmul.f32 %v127, %v757
    %v761 = vmul.f32 %v131, %v757
    %v762 = vmul.f32 %v135, %v757
    %v763 = vmul.f32 %v139, %v757
    %v764 = vmul.f32 %v143, %v757
    %v765 = vmul.f32 %v147, %v757
    %v766 = vmul.f32 %v151, %v757
    %v767 = vmul.f32 %v155, %v757
    %v768 = vmul.f32 %v159, %v757
    %v769 = vmul.f32 %v163, %v757
    %v770 = vmul.f32 %v167, %v757
    %v771 = vmul.f32 %v171, %v757
    %v772 = vmul.f32 %v175, %v757
    %v773 = vmul.f32 %v179, %v757
    %v774 = vadd.f32 %v738, %v758
    %v775 = vadd.f32 %v739, %v759
    %v776 = vadd.f32 %v740, %v760
    %v777 = vadd.f32 %v741, %v761
    %v778 = vadd.f32 %v742, %v762
    %v779 = vadd.f32 %v743, %v763
    %v780 = vadd.f32 %v744, %v764
    %v781 = vadd.f32 %v745, %v765
    %v782 = vadd.f32 %v746, %v766
    %v783 = vadd.f32 %v747, %v767
    %v784 = vadd.f32 %v748, %v768
    %v785 = vadd.f32 %v749, %v769
    %v786 = vadd.f32 %v750, %v770
    %v787 = vadd.f32 %v751, %v771
    %v788 = vadd.f32 %v752, %v772
    %v789 = vadd.f32 %v753, %v773
    %v790 = vlaneseq
    %v791 = vshrl.u32 %v790, 7
    %v792 = vsub.s32 2, %v791
    %v793 = vrot.slane %v733, %v792
    %v794 = vmul.f32 %v183, %v793
    %v795 = vmul.f32 %v187, %v793
    %v796 = vmul.f32 %v191, %v793
    %v797 = vmul.f32 %v195, %v793
    %v798 = vmul.f32 %v199, %v793
    %v799 = vmul.f32 %v203, %v793
    %v800 = vmul.f32 %v207, %v793
    %v801 = vmul.f32 %v211, %v793
    %v802 = vmul.f32 %v215, %v793
    %v803 = vmul.f32 %v219, %v793
    %v804 = vmul.f32 %v223, %v793
    %v805 = vmul.f32 %v227, %v793
    %v806 = vmul.f32 %v231, %v793
    %v807 = vmul.f32 %v235, %v793
    %v808 = vmul.f32 %v239, %v793
    %v809 = vmul.f32 %v243, %v793
    %v810 = vadd.f32 %v774, %v794
    %v811 = vadd.f32 %v775, %v795
    %v812 = vadd.f32 %v776, %v796
    %v813 = vadd.f32 %v777, %v797
    %v814 = vadd.f32 %v778, %v798
    %v815 = vadd.f32 %v779, %v799
    %v816 = vadd.f32 %v780, %v800
    %v817 = vadd.f32 %v781, %v801
    %v818 = vadd.f32 %v782, %v802
    %v819 = vadd.f32 %v783, %v803
    %v820 = vadd.f32 %v784, %v804
    %v821 = vadd.f32 %v785, %v805
    %v822 = vadd.f32 %v786, %v806
    %v823 = vadd.f32 %v787, %v807
    %v824 = vadd.f32 %v788, %v808
    %v825 = vadd.f32 %v789, %v809
    %v826 = vmax.f32 %v810, 0.0
    %v827 = vmax.f32 %v811, 0.0
    %v828 = vmax.f32 %v812, 0.0
    %v829 = vmax.f32 %v813, 0.0
    %v830 = vmax.f32 %v814, 0.0
    %v831 = vmax.f32 %v815, 0.0
    %v832 = vmax.f32 %v816, 0.0
    %v833 = vmax.f32 %v817, 0.0
    %v834 = vmax.f32 %v818, 0.0
    %v835 = vmax.f32 %v819, 0.0
    %v836 = vmax.f32 %v820, 0.0
    %v837 = vmax.f32 %v821, 0.0
    %v838 = vmax.f32 %v822, 0.0
    %v839 = vmax.f32 %v823, 0.0
    %v840 = vmax.f32 %v824, 0.0
    %v841 = vmax.f32 %v825, 0.0
    %842 = vadd.xlane.f32.xlu0 %v826
    %v843 = vpop.xlane.xlu0 %842
    %844 = vadd.xlane.f32.xlu0 %v827
    %v845 = vpop.xlane.xlu0 %844
    %846 = vadd.xlane.f32.xlu0 %v828
    %v847 = vpop.xlane.xlu0 %846
    %848 = vadd.xlane.f32.xlu0 %v829
    %v849 = vpop.xlane.xlu0 %848
    %850 = vadd.xlane.f32.xlu0 %v830
    %v851 = vpop.xlane.xlu0 %850
    %852 = vadd.xlane.f32.xlu0 %v831
    %v853 = vpop.xlane.xlu0 %852
    %854 = vadd.xlane.f32.xlu0 %v832
    %v855 = vpop.xlane.xlu0 %854
    %856 = vadd.xlane.f32.xlu0 %v833
    %v857 = vpop.xlane.xlu0 %856
    %858 = vadd.xlane.f32.xlu0 %v834
    %v859 = vpop.xlane.xlu0 %858
    %860 = vadd.xlane.f32.xlu0 %v835
    %v861 = vpop.xlane.xlu0 %860
    %862 = vadd.xlane.f32.xlu0 %v836
    %v863 = vpop.xlane.xlu0 %862
    %864 = vadd.xlane.f32.xlu0 %v837
    %v865 = vpop.xlane.xlu0 %864
    %866 = vadd.xlane.f32.xlu0 %v838
    %v867 = vpop.xlane.xlu0 %866
    %868 = vadd.xlane.f32.xlu0 %v839
    %v869 = vpop.xlane.xlu0 %868
    %870 = vadd.xlane.f32.xlu0 %v840
    %v871 = vpop.xlane.xlu0 %870
    %872 = vadd.xlane.f32.xlu0 %v841
    %v873 = vpop.xlane.xlu0 %872
    %v874 = vadd.f32 %v717, %v843
    %v875 = vadd.f32 %v718, %v845
    %v876 = vadd.f32 %v719, %v847
    %v877 = vadd.f32 %v720, %v849
    %v878 = vadd.f32 %v721, %v851
    %v879 = vadd.f32 %v722, %v853
    %v880 = vadd.f32 %v723, %v855
    %v881 = vadd.f32 %v724, %v857
    %v882 = vadd.f32 %v725, %v859
    %v883 = vadd.f32 %v726, %v861
    %v884 = vadd.f32 %v727, %v863
    %v885 = vadd.f32 %v728, %v865
    %v886 = vadd.f32 %v729, %v867
    %v887 = vadd.f32 %v730, %v869
    %v888 = vadd.f32 %v731, %v871
    %v889 = vadd.f32 %v732, %v873
    %v890 = vmul.f32 %v874, 0.00390625
    %v891 = vmul.f32 %v875, 0.00390625
    %v892 = vmul.f32 %v876, 0.00390625
    %v893 = vmul.f32 %v877, 0.00390625
    %v894 = vmul.f32 %v878, 0.00390625
    %v895 = vmul.f32 %v879, 0.00390625
    %v896 = vmul.f32 %v880, 0.00390625
    %v897 = vmul.f32 %v881, 0.00390625
    %v898 = vmul.f32 %v882, 0.00390625
    %v899 = vmul.f32 %v883, 0.00390625
    %v900 = vmul.f32 %v884, 0.00390625
    %v901 = vmul.f32 %v885, 0.00390625
    %v902 = vmul.f32 %v886, 0.00390625
    %v903 = vmul.f32 %v887, 0.00390625
    %v904 = vmul.f32 %v888, 0.00390625
    %v905 = vmul.f32 %v889, 0.00390625
    %vm906 = vcmask 7168
    %v907 = vsel %vm906, %v559, %v890
    %v908 = vsel %vm906, %v560, %v891
    %v909 = vsel %vm906, %v561, %v892
    %v910 = vsel %vm906, %v562, %v893
    %v911 = vsel %vm906, %v563, %v894
    %v912 = vsel %vm906, %v564, %v895
    %v913 = vsel %vm906, %v565, %v896
    %v914 = vsel %vm906, %v566, %v897
    %v915 = vsel %vm906, %v567, %v898
    %v916 = vsel %vm906, %v568, %v899
    %v917 = vsel %vm906, %v569, %v900
    %v918 = vsel %vm906, %v570, %v901
    %v919 = vsel %vm906, %v571, %v902
    %v920 = vsel %vm906, %v572, %v903
    %v921 = vsel %vm906, %v573, %v904
    %v922 = vsel %vm906, %v574, %v905
    %vm923 = vcmask 15360
    %v924 = vsel %vm923, %v907, 0.0
    %v925 = vsel %vm923, %v908, 0.0
    %v926 = vsel %vm923, %v909, 0.0
    %v927 = vsel %vm923, %v910, 0.0
    %v928 = vsel %vm923, %v911, 0.0
    %v929 = vsel %vm923, %v912, 0.0
    %v930 = vsel %vm923, %v913, 0.0
    %v931 = vsel %vm923, %v914, 0.0
    %v932 = vsel %vm923, %v915, 0.0
    %v933 = vsel %vm923, %v916, 0.0
    %v934 = vsel %vm923, %v917, 0.0
    %v935 = vsel %vm923, %v918, 0.0
    %v936 = vsel %vm923, %v919, 0.0
    %v937 = vsel %vm923, %v920, 0.0
    %v938 = vsel %vm923, %v921, 0.0
    %v939 = vsel %vm923, %v922, 0.0
    %v940 = vld [vmem:[%s2] sm:$0xff]
    %v941 = vld [vmem:[%s2 + $0x8] sm:$0xff]
    %v942 = vld [vmem:[%s2 + $0x10] sm:$0xff]
    %v943 = vld [vmem:[%s2 + $0x18] sm:$0xff]
    %v944 = vld [vmem:[%s2 + $0x20] sm:$0xff]
    %v945 = vld [vmem:[%s2 + $0x28] sm:$0xff]
    %v946 = vld [vmem:[%s2 + $0x30] sm:$0xff]
    %v947 = vld [vmem:[%s2 + $0x38] sm:$0xff]
    %v948 = vld [vmem:[%s2 + $0x40] sm:$0xff]
    %v949 = vld [vmem:[%s2 + $0x48] sm:$0xff]
    %v950 = vld [vmem:[%s2 + $0x50] sm:$0xff]
    %v951 = vld [vmem:[%s2 + $0x58] sm:$0xff]
    %v952 = vld [vmem:[%s2 + $0x60] sm:$0xff]
    %v953 = vld [vmem:[%s2 + $0x68] sm:$0xff]
    %v954 = vld [vmem:[%s2 + $0x70] sm:$0xff]
    %v955 = vld [vmem:[%s2 + $0x78] sm:$0xff]
    %v956 = vld [vmem:[%s3] sm:$0x1]
    %v958 = vlaneseq
    %v959 = vshrl.u32 %v958, 7
    %v960 = vsub.s32 0, %v959
    %v961 = vrot.slane %v956, %v960
    %963 = vxpose.xlu0.b32.start [1/16] %v924, 128
    %964 = vxpose.xlu0.b32.cont [2/16] %v925, 128
    %965 = vxpose.xlu0.b32.cont [3/16] %v926, 128
    %966 = vxpose.xlu0.b32.cont [4/16] %v927, 128
    %967 = vxpose.xlu0.b32.cont [5/16] %v928, 128
    %968 = vxpose.xlu0.b32.cont [6/16] %v929, 128
    %969 = vxpose.xlu0.b32.cont [7/16] %v930, 128
    %970 = vxpose.xlu0.b32.cont [8/16] %v931, 128
    %971 = vxpose.xlu0.b32.cont [9/16] %v932, 128
    %972 = vxpose.xlu0.b32.cont [10/16] %v933, 128
    %973 = vxpose.xlu0.b32.cont [11/16] %v934, 128
    %974 = vxpose.xlu0.b32.cont [12/16] %v935, 128
    %975 = vxpose.xlu0.b32.cont [13/16] %v936, 128
    %976 = vxpose.xlu0.b32.cont [14/16] %v937, 128
    %977 = vxpose.xlu0.b32.cont [15/16] %v938, 128
    %978 = vxpose.xlu0.b32.end [16/16] %v939, 128
    %v979 = vpop.trf.xlu0
    %v980 = vpop.trf.xlu0
    %v981 = vpop.trf.xlu0
    %v982 = vpop.trf.xlu0
    %v983 = vpop.trf.xlu0
    %v984 = vpop.trf.xlu0
    %v985 = vpop.trf.xlu0
    %v986 = vpop.trf.xlu0
    %v987 = vpop.trf.xlu0
    %v988 = vpop.trf.xlu0
    %v989 = vpop.trf.xlu0
    %v990 = vpop.trf.xlu0
    %v991 = vpop.trf.xlu0
    %v992 = vpop.trf.xlu0
    %v993 = vpop.trf.xlu0
    %v994 = vpop.trf.xlu0
    %995 = vmatprep.subr.mxu0 0.0
    %996 = vmatpush1.msra.mxu0 %v940
    %997 = vmatprep.subr.mxu0 0.0
    %998 = vmatpush1.msra.mxu0 %v941
    %999 = vmatprep.subr.mxu0 0.0
    %1000 = vmatpush1.msra.mxu0 %v942
    %1001 = vmatprep.subr.mxu0 0.0
    %1002 = vmatpush1.msra.mxu0 %v943
    %1003 = vmatprep.subr.mxu0 0.0
    %1004 = vmatpush1.msra.mxu0 %v944
    %1005 = vmatprep.subr.mxu0 0.0
    %1006 = vmatpush1.msra.mxu0 %v945
    %1007 = vmatprep.subr.mxu0 0.0
    %1008 = vmatpush1.msra.mxu0 %v946
    %1009 = vmatprep.subr.mxu0 0.0
    %1010 = vmatpush1.msra.mxu0 %v947
    %1011 = vmatprep.subr.mxu0 0.0
    %1012 = vmatpush1.msra.mxu0 %v948
    %1013 = vmatprep.subr.mxu0 0.0
    %1014 = vmatpush1.msra.mxu0 %v949
    %1015 = vmatprep.subr.mxu0 0.0
    %1016 = vmatpush1.msra.mxu0 %v950
    %1017 = vmatprep.subr.mxu0 0.0
    %1018 = vmatpush1.msra.mxu0 %v951
    %1019 = vmatprep.subr.mxu0 0.0
    %1020 = vmatpush1.msra.mxu0 %v952
    %1021 = vmatprep.subr.mxu0 0.0
    %1022 = vmatpush1.msra.mxu0 %v953
    %1023 = vmatprep.subr.mxu0 0.0
    %1024 = vmatpush1.msra.mxu0 %v954
    %1025 = vmatprep.subr.mxu0 0.0
    %1026 = vmatpush1.msra.mxu0 %v955
    %1027 = vmatprep.subr.mxu0 0.0
    %1028 = vmatpush1.msra.mxu0 0.0
    %1029 = vmatprep.subr.mxu0 0.0
    %1030 = vmatpush1.msra.mxu0 0.0
    %1031 = vmatprep.subr.mxu0 0.0
    %1032 = vmatpush1.msra.mxu0 0.0
    %1033 = vmatprep.subr.mxu0 0.0
    %1034 = vmatpush1.msra.mxu0 0.0
    %1035 = vmatprep.subr.mxu0 0.0
    %1036 = vmatpush1.msra.mxu0 0.0
    %1037 = vmatprep.subr.mxu0 0.0
    %1038 = vmatpush1.msra.mxu0 0.0
    %1039 = vmatprep.subr.mxu0 0.0
    %1040 = vmatpush1.msra.mxu0 0.0
    %1041 = vmatprep.subr.mxu0 0.0
    %1042 = vmatpush1.msra.mxu0 0.0
    %1043 = vmatprep.subr.mxu0 0.0
    %1044 = vmatpush1.msra.mxu0 0.0
    %1045 = vmatprep.subr.mxu0 0.0
    %1046 = vmatpush1.msra.mxu0 0.0
    %1047 = vmatprep.subr.mxu0 0.0
    %1048 = vmatpush1.msra.mxu0 0.0
    %1049 = vmatprep.subr.mxu0 0.0
    %1050 = vmatpush1.msra.mxu0 0.0
    %1051 = vmatprep.subr.mxu0 0.0
    %1052 = vmatpush1.msra.mxu0 0.0
    %1053 = vmatprep.subr.mxu0 0.0
    %1054 = vmatpush1.msra.mxu0 0.0
    %1055 = vmatprep.subr.mxu0 0.0
    %1056 = vmatpush1.msra.mxu0 0.0
    %1057 = vmatprep.subr.mxu0 0.0
    %1058 = vmatpush1.msra.mxu0 0.0
    %1059 = vmatprep.mubr.f32.mxu0 0.0
    %1060 = vmatmul.mubr.f32.gmra.mrb[0].mxu0 %v979
    %v1061 = vpop.f32.mrb[0].mxu0
    %v1062 = vadd.f32 %v961, %v1061
    %v1063 = vpop.f32.mrb[0].mxu0
    %1064 = vdwg.mxu0
    %v1065 = vmax.f32 %v1062, 0.0
    %v1066 = vld [vmem:[%s4] sm:$0xff]
    %v1067 = vmul.f32 %v1065, %v1066
    %1068 = vst [vmem:[#allocation2] sm:$0xff] %v1067
    // Predicated region
    $region22: #{tpu_custom_call.1} parent=1 // pred_check
      _
    $region23: #{tpu_custom_call.1} parent=1 // pred_check_branch
      %1070 = sbr.rel (0) target = $region25
    $region24: #{tpu_custom_call.1} parent=1 // pred_region
      %s1072 = ssub.s32 128, 128
      %1073 = vsyncadd [#allocation3], %s1072
      %s1075 = sshll.u32 [#allocation2], 4
      %s1076 = int_to_ptr.vmem [resolvable:$true] %s1075
      %1078 = dma.vmem_to_hbm [thread:$0]  %s1076, 128, %s5, [#allocation3]
    $region25: #{tpu_custom_call.1} parent=1 // pred_fallthru
      _
    // Predicated region
    $region26: #{tpu_custom_call.1} parent=1 // pred_check
      _
    $region27: #{tpu_custom_call.1} parent=1 // pred_check_branch
      %1080 = sbr.rel (0) target = $region29
    $region28: #{tpu_custom_call.1} parent=1 // pred_region
      %1081 = dma.done [#allocation3], 128
    $region29: #{tpu_custom_call.1} parent=1 // pred_fallthru
      _
    %1082 = vsyncpa [#allocation3], 1

</llo_original>
